<compile_context>
chip_gen: v7x
topology: tpu7x:2x2x1
jax: 0.10.0
libtpu: 0.0.40
codegen_flags: <defaults>
</compile_context>

<pallas_src>
import jax
import jax.numpy as jnp
from jax.experimental import pallas as pl
from jax.experimental.pallas import tpu as pltpu

INPUT_SIZE = 39
HIDDEN = 64
OUT_FEATURES = 2


def lstm_recurrence_kernel(gx_ref, whh_ref, wout_ref, bout_ref, out_ref,
                           h_ref, c_ref):
    """One grid step = one chunk of `tT` timesteps of the LSTM recurrence.

    gx_ref  : (tT, Bp, 4H)  precomputed x@W_ih + b (time-major chunk, streamed)
    whh_ref : (H, 4H)       hidden->gates weight (pre-transposed, i,f,g,o order)
    wout_ref: (H, O)        output linear weight (pre-transposed)
    bout_ref: (1, O)        output linear bias
    out_ref : (Bp, O)       result (written on the last grid step only)
    h_ref   : (Bp, H)       VMEM scratch hidden state (persists across grid)
    c_ref   : (Bp, H)       VMEM scratch cell state   (persists across grid)
    """
    tT = gx_ref.shape[0]
    H = whh_ref.shape[0]

    @pl.when(pl.program_id(0) == 0)
    def _():
        h_ref[...] = jnp.zeros_like(h_ref)
        c_ref[...] = jnp.zeros_like(c_ref)

    whh = whh_ref[...]
    h = h_ref[...]
    c = c_ref[...]

    # Fully unrolled over the static chunk length: only one small MXU op per
    # timestep on the critical path; EUP/VPU work of step t overlaps the
    # next step's matmul push.
    for t in range(tT):
        gates = gx_ref[t] + jnp.dot(h, whh, preferred_element_type=jnp.float32)
        i_g = jax.nn.sigmoid(gates[:, 0 * H:1 * H])
        f_g = jax.nn.sigmoid(gates[:, 1 * H:2 * H])
        g_g = jnp.tanh(gates[:, 2 * H:3 * H])
        o_g = jax.nn.sigmoid(gates[:, 3 * H:4 * H])
        c = f_g * c + i_g * g_g
        h = o_g * jnp.tanh(c)

    h_ref[...] = h
    c_ref[...] = c

    @pl.when(pl.program_id(0) == pl.num_programs(0) - 1)
    def _():
        out_ref[...] = (
            jnp.dot(h, wout_ref[...], preferred_element_type=jnp.float32)
            + bout_ref[...]
        )


def rnn_forward(x, params, *, time_block=8):
    """x: (B, T, INPUT_SIZE) float32 -> (B, 2) float32."""
    w_ih, w_hh, b_ih, b_hh, w_out, b_out = (
        params["w_ih"], params["w_hh"], params["b_ih"],
        params["b_hh"], params["w_out"], params["b_out"],
    )
    B, T, _ = x.shape
    H = w_hh.shape[1]
    O = w_out.shape[0]

    # --- pad batch to a multiple of 8 sublanes (rows are independent) ------
    Bp = ((B + 7) // 8) * 8
    if Bp != B:
        x = jnp.pad(x, ((0, Bp - B), (0, 0), (0, 0)))

    # --- hoisted input projection, emitted directly time-major -------------
    # gates_x[t, b, :] = x[b, t, :] @ W_ih^T + (b_ih + b_hh)
    gates_x = (
        jnp.einsum("btf,gf->tbg", x, w_ih, preferred_element_type=jnp.float32)
        + (b_ih + b_hh)
    )  # (T, Bp, 4H)

    # --- left-pad time to a multiple of the time block ----------------------
    # Zero gate pre-activations with (h, c) == 0 give c_new = 0.5*0 + 0.5*0 = 0
    # and h_new = 0.5*tanh(0) = 0, i.e. an exact no-op, so left padding keeps
    # the final timestep (and the result) bit-identical.
    tT = time_block
    n_blocks = -(-T // tT)
    T_pad = n_blocks * tT
    if T_pad != T:
        gates_x = jnp.pad(gates_x, ((T_pad - T, 0), (0, 0), (0, 0)))

    whh_t = jnp.transpose(w_hh, (1, 0))   # (H, 4H)
    wout_t = jnp.transpose(w_out, (1, 0))  # (H, O)
    bout = b_out.reshape(1, O)             # (1, O)

    out = pl.pallas_call(
        lstm_recurrence_kernel,
        out_shape=jax.ShapeDtypeStruct((Bp, O), jnp.float32),
        grid_spec=pltpu.PrefetchScalarGridSpec(
            num_scalar_prefetch=0,
            grid=(n_blocks,),
            in_specs=[
                # streamed time-chunks of the precomputed gate input
                pl.BlockSpec((tT, Bp, 4 * H), lambda t: (t, 0, 0)),
                # weights / bias resident for the whole grid
                pl.BlockSpec((H, 4 * H), lambda t: (0, 0)),
                pl.BlockSpec((H, O), lambda t: (0, 0)),
                pl.BlockSpec((1, O), lambda t: (0, 0)),
            ],
            out_specs=pl.BlockSpec((Bp, O), lambda t: (0, 0)),
            scratch_shapes=[
                pltpu.VMEM((Bp, H), jnp.float32),  # h state
                pltpu.VMEM((Bp, H), jnp.float32),  # c state
            ],
        ),
        # Time axis is a true recurrence -> serial.
        compiler_params=pltpu.CompilerParams(
            dimension_semantics=("arbitrary",),
        ),
    )(gates_x, whh_t, wout_t, bout)

    return out[:B]


def init_params(key):
    """Deterministic parameter init matching PyTorch LSTM/Linear shapes."""
    H, F, O = HIDDEN, INPUT_SIZE, OUT_FEATURES
    k = jax.random.split(key, 6)
    bound = 1.0 / jnp.sqrt(jnp.float32(H))
    u = lambda kk, shape: jax.random.uniform(kk, shape, jnp.float32, -bound, bound)
    return {
        "w_ih": u(k[0], (4 * H, F)),    # weight_ih_l0
        "w_hh": u(k[1], (4 * H, H)),    # weight_hh_l0
        "b_ih": u(k[2], (4 * H,)),      # bias_ih_l0
        "b_hh": u(k[3], (4 * H,)),      # bias_hh_l0
        "w_out": u(k[4], (O, H)),       # out.weight
        "b_out": u(k[5], (O,)),         # out.bias
    }


def rnn_forward_ref(x, params):
    """Pure-JAX reference of the PyTorch forward for a correctness check."""
    w_ih, w_hh = params["w_ih"], params["w_hh"]
    b = params["b_ih"] + params["b_hh"]
    B, T, _ = x.shape
    H = w_hh.shape[1]
    h = jnp.zeros((B, H), jnp.float32)
    c = jnp.zeros((B, H), jnp.float32)
    for t in range(T):
        gates = x[:, t, :] @ w_ih.T + h @ w_hh.T + b
        i_g = jax.nn.sigmoid(gates[:, 0 * H:1 * H])
        f_g = jax.nn.sigmoid(gates[:, 1 * H:2 * H])
        g_g = jnp.tanh(gates[:, 2 * H:3 * H])
        o_g = jax.nn.sigmoid(gates[:, 3 * H:4 * H])
        c = f_g * c + i_g * g_g
        h = o_g * jnp.tanh(c)
    return h @ params["w_out"].T + params["b_out"]


if __name__ == "__main__":
    key = jax.random.PRNGKey(0)
    kx, kp = jax.random.split(key)

    B, T = 2, 8
    x = jax.random.normal(kx, (B, T, INPUT_SIZE), jnp.float32)
    params = init_params(kp)

    out = rnn_forward(x, params)
    out = jax.block_until_ready(out)

    ref = rnn_forward_ref(x, params)
    assert out.shape == (B, OUT_FEATURES)
    assert jnp.allclose(out, ref, rtol=1e-5, atol=1e-5)

    print("KERNEL_OK")
</pallas_src>

<mosaic_0001>
module attributes {stable_mosaic.version = 11 : i64} {
  func.func @lstm_recurrence_kernel(%arg0: i32, %arg1: memref<8x8x256xf32, #tpu.memory_space<vmem>>, %arg2: memref<64x256xf32, #tpu.memory_space<vmem>>, %arg3: memref<64x2xf32, #tpu.memory_space<vmem>>, %arg4: memref<1x2xf32, #tpu.memory_space<vmem>>, %arg5: memref<8x2xf32, #tpu.memory_space<vmem>>, %arg6: memref<8x64xf32, #tpu.memory_space<vmem>>, %arg7: memref<8x64xf32, #tpu.memory_space<vmem>>) attributes {dimension_semantics = [#tpu.dimension_semantics<arbitrary>], iteration_bounds = array<i64: 1>, scalar_prefetch = 0 : i64, scratch_operands = 2 : i64, tpu.core_type = #tpu.core_type<tc>, window_params = [{transform_indices = @transform_0, window_bounds = array<i64: 8, 8, 256>}, {pipeline_mode = #tpu.pipeline_mode<synchronous>, transform_indices = @transform_1, window_bounds = array<i64: 64, 256>}, {pipeline_mode = #tpu.pipeline_mode<synchronous>, transform_indices = @transform_2, window_bounds = array<i64: 64, 2>}, {pipeline_mode = #tpu.pipeline_mode<synchronous>, transform_indices = @transform_3, window_bounds = array<i64: 1, 2>}, {pipeline_mode = #tpu.pipeline_mode<synchronous>, transform_indices = @transform_4, window_bounds = array<i64: 8, 2>}]} {
    %c0_i32 = arith.constant 0 : i32
    %0 = arith.cmpi eq, %arg0, %c0_i32 : i32
    %1 = arith.extui %0 : i1 to i32
    %c0_i32_0 = arith.constant 0 : i32
    %2 = arith.cmpi ne, %1, %c0_i32_0 : i32
    scf.if %2 {
      %cst_60 = arith.constant 0.000000e+00 : f32
      %243 = vector.broadcast %cst_60 : f32 to vector<8x64xf32>
      %c0_61 = arith.constant 0 : index
      %c0_62 = arith.constant 0 : index
      %244 = vector.load %arg6[%c0_61, %c0_62] : memref<8x64xf32, #tpu.memory_space<vmem>>, vector<8x64xf32>
      tpu.vector_store %arg6[%c0_61, %c0_62], %243 {strides = array<i32>} : memref<8x64xf32, #tpu.memory_space<vmem>>, vector<8x64xf32>,
      %cst_63 = arith.constant 0.000000e+00 : f32
      %245 = vector.broadcast %cst_63 : f32 to vector<8x64xf32>
      %c0_64 = arith.constant 0 : index
      %c0_65 = arith.constant 0 : index
      %246 = vector.load %arg7[%c0_64, %c0_65] : memref<8x64xf32, #tpu.memory_space<vmem>>, vector<8x64xf32>
      tpu.vector_store %arg7[%c0_64, %c0_65], %245 {strides = array<i32>} : memref<8x64xf32, #tpu.memory_space<vmem>>, vector<8x64xf32>,
    } else {
    }
    %c0 = arith.constant 0 : index
    %c0_1 = arith.constant 0 : index
    %3 = vector.load %arg2[%c0, %c0_1] : memref<64x256xf32, #tpu.memory_space<vmem>>, vector<64x256xf32>
    %c0_2 = arith.constant 0 : index
    %c0_3 = arith.constant 0 : index
    %4 = vector.load %arg6[%c0_2, %c0_3] : memref<8x64xf32, #tpu.memory_space<vmem>>, vector<8x64xf32>
    %c0_4 = arith.constant 0 : index
    %c0_5 = arith.constant 0 : index
    %5 = vector.load %arg7[%c0_4, %c0_5] : memref<8x64xf32, #tpu.memory_space<vmem>>, vector<8x64xf32>
    %c0_6 = arith.constant 0 : index
    %c0_7 = arith.constant 0 : index
    %c0_8 = arith.constant 0 : index
    %6 = vector.load %arg1[%c0_6, %c0_7, %c0_8] : memref<8x8x256xf32, #tpu.memory_space<vmem>>, vector<1x8x256xf32>
    %7 = vector.shape_cast %6 : vector<1x8x256xf32> to vector<8x256xf32>
    %cst = arith.constant dense<0.000000e+00> : vector<8x256xf32>
    %8 = tpu.matmul %4, %3, %cst {dimension_numbers = #tpu.dot_dimension_numbers<[1], [0], [0], [1], [0, 0, 1, 1], [], []>} : vector<8x64xf32>, vector<64x256xf32>, vector<8x256xf32> -> vector<8x256xf32>
    %9 = arith.addf %7, %8 : vector<8x256xf32>
    %10 = vector.extract_strided_slice %9 {offsets = [0, 0], sizes = [8, 64], strides = [1, 1]} : vector<8x256xf32> to vector<8x64xf32>
    %11 = arith.negf %10 : vector<8x64xf32>
    %12 = math.exp %11 : vector<8x64xf32>
    %cst_9 = arith.constant 1.000000e+00 : f32
    %13 = vector.broadcast %cst_9 : f32 to vector<8x64xf32>
    %14 = arith.addf %13, %12 : vector<8x64xf32>
    %15 = arith.divf %13, %14 : vector<8x64xf32>
    %16 = vector.extract_strided_slice %9 {offsets = [0, 64], sizes = [8, 64], strides = [1, 1]} : vector<8x256xf32> to vector<8x64xf32>
    %17 = arith.negf %16 : vector<8x64xf32>
    %18 = math.exp %17 : vector<8x64xf32>
    %cst_10 = arith.constant 1.000000e+00 : f32
    %19 = vector.broadcast %cst_10 : f32 to vector<8x64xf32>
    %20 = arith.addf %19, %18 : vector<8x64xf32>
    %21 = arith.divf %19, %20 : vector<8x64xf32>
    %22 = vector.extract_strided_slice %9 {offsets = [0, 128], sizes = [8, 64], strides = [1, 1]} : vector<8x256xf32> to vector<8x64xf32>
    %23 = math.tanh %22 : vector<8x64xf32>
    %24 = vector.extract_strided_slice %9 {offsets = [0, 192], sizes = [8, 64], strides = [1, 1]} : vector<8x256xf32> to vector<8x64xf32>
    %25 = arith.negf %24 : vector<8x64xf32>
    %26 = math.exp %25 : vector<8x64xf32>
    %cst_11 = arith.constant 1.000000e+00 : f32
    %27 = vector.broadcast %cst_11 : f32 to vector<8x64xf32>
    %28 = arith.addf %27, %26 : vector<8x64xf32>
    %29 = arith.divf %27, %28 : vector<8x64xf32>
    %30 = arith.mulf %21, %5 : vector<8x64xf32>
    %31 = arith.mulf %15, %23 : vector<8x64xf32>
    %32 = arith.addf %30, %31 : vector<8x64xf32>
    %33 = math.tanh %32 : vector<8x64xf32>
    %34 = arith.mulf %29, %33 : vector<8x64xf32>
    %c1 = arith.constant 1 : index
    %c0_12 = arith.constant 0 : index
    %c0_13 = arith.constant 0 : index
    %35 = vector.load %arg1[%c1, %c0_12, %c0_13] : memref<8x8x256xf32, #tpu.memory_space<vmem>>, vector<1x8x256xf32>
    %36 = vector.shape_cast %35 : vector<1x8x256xf32> to vector<8x256xf32>
    %cst_14 = arith.constant dense<0.000000e+00> : vector<8x256xf32>
    %37 = tpu.matmul %34, %3, %cst_14 {dimension_numbers = #tpu.dot_dimension_numbers<[1], [0], [0], [1], [0, 0, 1, 1], [], []>} : vector<8x64xf32>, vector<64x256xf32>, vector<8x256xf32> -> vector<8x256xf32>
    %38 = arith.addf %36, %37 : vector<8x256xf32>
    %39 = vector.extract_strided_slice %38 {offsets = [0, 0], sizes = [8, 64], strides = [1, 1]} : vector<8x256xf32> to vector<8x64xf32>
    %40 = arith.negf %39 : vector<8x64xf32>
    %41 = math.exp %40 : vector<8x64xf32>
    %cst_15 = arith.constant 1.000000e+00 : f32
    %42 = vector.broadcast %cst_15 : f32 to vector<8x64xf32>
    %43 = arith.addf %42, %41 : vector<8x64xf32>
    %44 = arith.divf %42, %43 : vector<8x64xf32>
    %45 = vector.extract_strided_slice %38 {offsets = [0, 64], sizes = [8, 64], strides = [1, 1]} : vector<8x256xf32> to vector<8x64xf32>
    %46 = arith.negf %45 : vector<8x64xf32>
    %47 = math.exp %46 : vector<8x64xf32>
    %cst_16 = arith.constant 1.000000e+00 : f32
    %48 = vector.broadcast %cst_16 : f32 to vector<8x64xf32>
    %49 = arith.addf %48, %47 : vector<8x64xf32>
    %50 = arith.divf %48, %49 : vector<8x64xf32>
    %51 = vector.extract_strided_slice %38 {offsets = [0, 128], sizes = [8, 64], strides = [1, 1]} : vector<8x256xf32> to vector<8x64xf32>
    %52 = math.tanh %51 : vector<8x64xf32>
    %53 = vector.extract_strided_slice %38 {offsets = [0, 192], sizes = [8, 64], strides = [1, 1]} : vector<8x256xf32> to vector<8x64xf32>
    %54 = arith.negf %53 : vector<8x64xf32>
    %55 = math.exp %54 : vector<8x64xf32>
    %cst_17 = arith.constant 1.000000e+00 : f32
    %56 = vector.broadcast %cst_17 : f32 to vector<8x64xf32>
    %57 = arith.addf %56, %55 : vector<8x64xf32>
    %58 = arith.divf %56, %57 : vector<8x64xf32>
    %59 = arith.mulf %50, %32 : vector<8x64xf32>
    %60 = arith.mulf %44, %52 : vector<8x64xf32>
    %61 = arith.addf %59, %60 : vector<8x64xf32>
    %62 = math.tanh %61 : vector<8x64xf32>
    %63 = arith.mulf %58, %62 : vector<8x64xf32>
    %c2 = arith.constant 2 : index
    %c0_18 = arith.constant 0 : index
    %c0_19 = arith.constant 0 : index
    %64 = vector.load %arg1[%c2, %c0_18, %c0_19] : memref<8x8x256xf32, #tpu.memory_space<vmem>>, vector<1x8x256xf32>
    %65 = vector.shape_cast %64 : vector<1x8x256xf32> to vector<8x256xf32>
    %cst_20 = arith.constant dense<0.000000e+00> : vector<8x256xf32>
    %66 = tpu.matmul %63, %3, %cst_20 {dimension_numbers = #tpu.dot_dimension_numbers<[1], [0], [0], [1], [0, 0, 1, 1], [], []>} : vector<8x64xf32>, vector<64x256xf32>, vector<8x256xf32> -> vector<8x256xf32>
    %67 = arith.addf %65, %66 : vector<8x256xf32>
    %68 = vector.extract_strided_slice %67 {offsets = [0, 0], sizes = [8, 64], strides = [1, 1]} : vector<8x256xf32> to vector<8x64xf32>
    %69 = arith.negf %68 : vector<8x64xf32>
    %70 = math.exp %69 : vector<8x64xf32>
    %cst_21 = arith.constant 1.000000e+00 : f32
    %71 = vector.broadcast %cst_21 : f32 to vector<8x64xf32>
    %72 = arith.addf %71, %70 : vector<8x64xf32>
    %73 = arith.divf %71, %72 : vector<8x64xf32>
    %74 = vector.extract_strided_slice %67 {offsets = [0, 64], sizes = [8, 64], strides = [1, 1]} : vector<8x256xf32> to vector<8x64xf32>
    %75 = arith.negf %74 : vector<8x64xf32>
    %76 = math.exp %75 : vector<8x64xf32>
    %cst_22 = arith.constant 1.000000e+00 : f32
    %77 = vector.broadcast %cst_22 : f32 to vector<8x64xf32>
    %78 = arith.addf %77, %76 : vector<8x64xf32>
    %79 = arith.divf %77, %78 : vector<8x64xf32>
    %80 = vector.extract_strided_slice %67 {offsets = [0, 128], sizes = [8, 64], strides = [1, 1]} : vector<8x256xf32> to vector<8x64xf32>
    %81 = math.tanh %80 : vector<8x64xf32>
    %82 = vector.extract_strided_slice %67 {offsets = [0, 192], sizes = [8, 64], strides = [1, 1]} : vector<8x256xf32> to vector<8x64xf32>
    %83 = arith.negf %82 : vector<8x64xf32>
    %84 = math.exp %83 : vector<8x64xf32>
    %cst_23 = arith.constant 1.000000e+00 : f32
    %85 = vector.broadcast %cst_23 : f32 to vector<8x64xf32>
    %86 = arith.addf %85, %84 : vector<8x64xf32>
    %87 = arith.divf %85, %86 : vector<8x64xf32>
    %88 = arith.mulf %79, %61 : vector<8x64xf32>
    %89 = arith.mulf %73, %81 : vector<8x64xf32>
    %90 = arith.addf %88, %89 : vector<8x64xf32>
    %91 = math.tanh %90 : vector<8x64xf32>
    %92 = arith.mulf %87, %91 : vector<8x64xf32>
    %c3 = arith.constant 3 : index
    %c0_24 = arith.constant 0 : index
    %c0_25 = arith.constant 0 : index
    %93 = vector.load %arg1[%c3, %c0_24, %c0_25] : memref<8x8x256xf32, #tpu.memory_space<vmem>>, vector<1x8x256xf32>
    %94 = vector.shape_cast %93 : vector<1x8x256xf32> to vector<8x256xf32>
    %cst_26 = arith.constant dense<0.000000e+00> : vector<8x256xf32>
    %95 = tpu.matmul %92, %3, %cst_26 {dimension_numbers = #tpu.dot_dimension_numbers<[1], [0], [0], [1], [0, 0, 1, 1], [], []>} : vector<8x64xf32>, vector<64x256xf32>, vector<8x256xf32> -> vector<8x256xf32>
    %96 = arith.addf %94, %95 : vector<8x256xf32>
    %97 = vector.extract_strided_slice %96 {offsets = [0, 0], sizes = [8, 64], strides = [1, 1]} : vector<8x256xf32> to vector<8x64xf32>
    %98 = arith.negf %97 : vector<8x64xf32>
    %99 = math.exp %98 : vector<8x64xf32>
    %cst_27 = arith.constant 1.000000e+00 : f32
    %100 = vector.broadcast %cst_27 : f32 to vector<8x64xf32>
    %101 = arith.addf %100, %99 : vector<8x64xf32>
    %102 = arith.divf %100, %101 : vector<8x64xf32>
    %103 = vector.extract_strided_slice %96 {offsets = [0, 64], sizes = [8, 64], strides = [1, 1]} : vector<8x256xf32> to vector<8x64xf32>
    %104 = arith.negf %103 : vector<8x64xf32>
    %105 = math.exp %104 : vector<8x64xf32>
    %cst_28 = arith.constant 1.000000e+00 : f32
    %106 = vector.broadcast %cst_28 : f32 to vector<8x64xf32>
    %107 = arith.addf %106, %105 : vector<8x64xf32>
    %108 = arith.divf %106, %107 : vector<8x64xf32>
    %109 = vector.extract_strided_slice %96 {offsets = [0, 128], sizes = [8, 64], strides = [1, 1]} : vector<8x256xf32> to vector<8x64xf32>
    %110 = math.tanh %109 : vector<8x64xf32>
    %111 = vector.extract_strided_slice %96 {offsets = [0, 192], sizes = [8, 64], strides = [1, 1]} : vector<8x256xf32> to vector<8x64xf32>
    %112 = arith.negf %111 : vector<8x64xf32>
    %113 = math.exp %112 : vector<8x64xf32>
    %cst_29 = arith.constant 1.000000e+00 : f32
    %114 = vector.broadcast %cst_29 : f32 to vector<8x64xf32>
    %115 = arith.addf %114, %113 : vector<8x64xf32>
    %116 = arith.divf %114, %115 : vector<8x64xf32>
    %117 = arith.mulf %108, %90 : vector<8x64xf32>
    %118 = arith.mulf %102, %110 : vector<8x64xf32>
    %119 = arith.addf %117, %118 : vector<8x64xf32>
    %120 = math.tanh %119 : vector<8x64xf32>
    %121 = arith.mulf %116, %120 : vector<8x64xf32>
    %c4 = arith.constant 4 : index
    %c0_30 = arith.constant 0 : index
    %c0_31 = arith.constant 0 : index
    %122 = vector.load %arg1[%c4, %c0_30, %c0_31] : memref<8x8x256xf32, #tpu.memory_space<vmem>>, vector<1x8x256xf32>
    %123 = vector.shape_cast %122 : vector<1x8x256xf32> to vector<8x256xf32>
    %cst_32 = arith.constant dense<0.000000e+00> : vector<8x256xf32>
    %124 = tpu.matmul %121, %3, %cst_32 {dimension_numbers = #tpu.dot_dimension_numbers<[1], [0], [0], [1], [0, 0, 1, 1], [], []>} : vector<8x64xf32>, vector<64x256xf32>, vector<8x256xf32> -> vector<8x256xf32>
    %125 = arith.addf %123, %124 : vector<8x256xf32>
    %126 = vector.extract_strided_slice %125 {offsets = [0, 0], sizes = [8, 64], strides = [1, 1]} : vector<8x256xf32> to vector<8x64xf32>
    %127 = arith.negf %126 : vector<8x64xf32>
    %128 = math.exp %127 : vector<8x64xf32>
    %cst_33 = arith.constant 1.000000e+00 : f32
    %129 = vector.broadcast %cst_33 : f32 to vector<8x64xf32>
    %130 = arith.addf %129, %128 : vector<8x64xf32>
    %131 = arith.divf %129, %130 : vector<8x64xf32>
    %132 = vector.extract_strided_slice %125 {offsets = [0, 64], sizes = [8, 64], strides = [1, 1]} : vector<8x256xf32> to vector<8x64xf32>
    %133 = arith.negf %132 : vector<8x64xf32>
    %134 = math.exp %133 : vector<8x64xf32>
    %cst_34 = arith.constant 1.000000e+00 : f32
    %135 = vector.broadcast %cst_34 : f32 to vector<8x64xf32>
    %136 = arith.addf %135, %134 : vector<8x64xf32>
    %137 = arith.divf %135, %136 : vector<8x64xf32>
    %138 = vector.extract_strided_slice %125 {offsets = [0, 128], sizes = [8, 64], strides = [1, 1]} : vector<8x256xf32> to vector<8x64xf32>
    %139 = math.tanh %138 : vector<8x64xf32>
    %140 = vector.extract_strided_slice %125 {offsets = [0, 192], sizes = [8, 64], strides = [1, 1]} : vector<8x256xf32> to vector<8x64xf32>
    %141 = arith.negf %140 : vector<8x64xf32>
    %142 = math.exp %141 : vector<8x64xf32>
    %cst_35 = arith.constant 1.000000e+00 : f32
    %143 = vector.broadcast %cst_35 : f32 to vector<8x64xf32>
    %144 = arith.addf %143, %142 : vector<8x64xf32>
    %145 = arith.divf %143, %144 : vector<8x64xf32>
    %146 = arith.mulf %137, %119 : vector<8x64xf32>
    %147 = arith.mulf %131, %139 : vector<8x64xf32>
    %148 = arith.addf %146, %147 : vector<8x64xf32>
    %149 = math.tanh %148 : vector<8x64xf32>
    %150 = arith.mulf %145, %149 : vector<8x64xf32>
    %c5 = arith.constant 5 : index
    %c0_36 = arith.constant 0 : index
    %c0_37 = arith.constant 0 : index
    %151 = vector.load %arg1[%c5, %c0_36, %c0_37] : memref<8x8x256xf32, #tpu.memory_space<vmem>>, vector<1x8x256xf32>
    %152 = vector.shape_cast %151 : vector<1x8x256xf32> to vector<8x256xf32>
    %cst_38 = arith.constant dense<0.000000e+00> : vector<8x256xf32>
    %153 = tpu.matmul %150, %3, %cst_38 {dimension_numbers = #tpu.dot_dimension_numbers<[1], [0], [0], [1], [0, 0, 1, 1], [], []>} : vector<8x64xf32>, vector<64x256xf32>, vector<8x256xf32> -> vector<8x256xf32>
    %154 = arith.addf %152, %153 : vector<8x256xf32>
    %155 = vector.extract_strided_slice %154 {offsets = [0, 0], sizes = [8, 64], strides = [1, 1]} : vector<8x256xf32> to vector<8x64xf32>
    %156 = arith.negf %155 : vector<8x64xf32>
    %157 = math.exp %156 : vector<8x64xf32>
    %cst_39 = arith.constant 1.000000e+00 : f32
    %158 = vector.broadcast %cst_39 : f32 to vector<8x64xf32>
    %159 = arith.addf %158, %157 : vector<8x64xf32>
    %160 = arith.divf %158, %159 : vector<8x64xf32>
    %161 = vector.extract_strided_slice %154 {offsets = [0, 64], sizes = [8, 64], strides = [1, 1]} : vector<8x256xf32> to vector<8x64xf32>
    %162 = arith.negf %161 : vector<8x64xf32>
    %163 = math.exp %162 : vector<8x64xf32>
    %cst_40 = arith.constant 1.000000e+00 : f32
    %164 = vector.broadcast %cst_40 : f32 to vector<8x64xf32>
    %165 = arith.addf %164, %163 : vector<8x64xf32>
    %166 = arith.divf %164, %165 : vector<8x64xf32>
    %167 = vector.extract_strided_slice %154 {offsets = [0, 128], sizes = [8, 64], strides = [1, 1]} : vector<8x256xf32> to vector<8x64xf32>
    %168 = math.tanh %167 : vector<8x64xf32>
    %169 = vector.extract_strided_slice %154 {offsets = [0, 192], sizes = [8, 64], strides = [1, 1]} : vector<8x256xf32> to vector<8x64xf32>
    %170 = arith.negf %169 : vector<8x64xf32>
    %171 = math.exp %170 : vector<8x64xf32>
    %cst_41 = arith.constant 1.000000e+00 : f32
    %172 = vector.broadcast %cst_41 : f32 to vector<8x64xf32>
    %173 = arith.addf %172, %171 : vector<8x64xf32>
    %174 = arith.divf %172, %173 : vector<8x64xf32>
    %175 = arith.mulf %166, %148 : vector<8x64xf32>
    %176 = arith.mulf %160, %168 : vector<8x64xf32>
    %177 = arith.addf %175, %176 : vector<8x64xf32>
    %178 = math.tanh %177 : vector<8x64xf32>
    %179 = arith.mulf %174, %178 : vector<8x64xf32>
    %c6 = arith.constant 6 : index
    %c0_42 = arith.constant 0 : index
    %c0_43 = arith.constant 0 : index
    %180 = vector.load %arg1[%c6, %c0_42, %c0_43] : memref<8x8x256xf32, #tpu.memory_space<vmem>>, vector<1x8x256xf32>
    %181 = vector.shape_cast %180 : vector<1x8x256xf32> to vector<8x256xf32>
    %cst_44 = arith.constant dense<0.000000e+00> : vector<8x256xf32>
    %182 = tpu.matmul %179, %3, %cst_44 {dimension_numbers = #tpu.dot_dimension_numbers<[1], [0], [0], [1], [0, 0, 1, 1], [], []>} : vector<8x64xf32>, vector<64x256xf32>, vector<8x256xf32> -> vector<8x256xf32>
    %183 = arith.addf %181, %182 : vector<8x256xf32>
    %184 = vector.extract_strided_slice %183 {offsets = [0, 0], sizes = [8, 64], strides = [1, 1]} : vector<8x256xf32> to vector<8x64xf32>
    %185 = arith.negf %184 : vector<8x64xf32>
    %186 = math.exp %185 : vector<8x64xf32>
    %cst_45 = arith.constant 1.000000e+00 : f32
    %187 = vector.broadcast %cst_45 : f32 to vector<8x64xf32>
    %188 = arith.addf %187, %186 : vector<8x64xf32>
    %189 = arith.divf %187, %188 : vector<8x64xf32>
    %190 = vector.extract_strided_slice %183 {offsets = [0, 64], sizes = [8, 64], strides = [1, 1]} : vector<8x256xf32> to vector<8x64xf32>
    %191 = arith.negf %190 : vector<8x64xf32>
    %192 = math.exp %191 : vector<8x64xf32>
    %cst_46 = arith.constant 1.000000e+00 : f32
    %193 = vector.broadcast %cst_46 : f32 to vector<8x64xf32>
    %194 = arith.addf %193, %192 : vector<8x64xf32>
    %195 = arith.divf %193, %194 : vector<8x64xf32>
    %196 = vector.extract_strided_slice %183 {offsets = [0, 128], sizes = [8, 64], strides = [1, 1]} : vector<8x256xf32> to vector<8x64xf32>
    %197 = math.tanh %196 : vector<8x64xf32>
    %198 = vector.extract_strided_slice %183 {offsets = [0, 192], sizes = [8, 64], strides = [1, 1]} : vector<8x256xf32> to vector<8x64xf32>
    %199 = arith.negf %198 : vector<8x64xf32>
    %200 = math.exp %199 : vector<8x64xf32>
    %cst_47 = arith.constant 1.000000e+00 : f32
    %201 = vector.broadcast %cst_47 : f32 to vector<8x64xf32>
    %202 = arith.addf %201, %200 : vector<8x64xf32>
    %203 = arith.divf %201, %202 : vector<8x64xf32>
    %204 = arith.mulf %195, %177 : vector<8x64xf32>
    %205 = arith.mulf %189, %197 : vector<8x64xf32>
    %206 = arith.addf %204, %205 : vector<8x64xf32>
    %207 = math.tanh %206 : vector<8x64xf32>
    %208 = arith.mulf %203, %207 : vector<8x64xf32>
    %c7 = arith.constant 7 : index
    %c0_48 = arith.constant 0 : index
    %c0_49 = arith.constant 0 : index
    %209 = vector.load %arg1[%c7, %c0_48, %c0_49] : memref<8x8x256xf32, #tpu.memory_space<vmem>>, vector<1x8x256xf32>
    %210 = vector.shape_cast %209 : vector<1x8x256xf32> to vector<8x256xf32>
    %cst_50 = arith.constant dense<0.000000e+00> : vector<8x256xf32>
    %211 = tpu.matmul %208, %3, %cst_50 {dimension_numbers = #tpu.dot_dimension_numbers<[1], [0], [0], [1], [0, 0, 1, 1], [], []>} : vector<8x64xf32>, vector<64x256xf32>, vector<8x256xf32> -> vector<8x256xf32>
    %212 = arith.addf %210, %211 : vector<8x256xf32>
    %213 = vector.extract_strided_slice %212 {offsets = [0, 0], sizes = [8, 64], strides = [1, 1]} : vector<8x256xf32> to vector<8x64xf32>
    %214 = arith.negf %213 : vector<8x64xf32>
    %215 = math.exp %214 : vector<8x64xf32>
    %cst_51 = arith.constant 1.000000e+00 : f32
    %216 = vector.broadcast %cst_51 : f32 to vector<8x64xf32>
    %217 = arith.addf %216, %215 : vector<8x64xf32>
    %218 = arith.divf %216, %217 : vector<8x64xf32>
    %219 = vector.extract_strided_slice %212 {offsets = [0, 64], sizes = [8, 64], strides = [1, 1]} : vector<8x256xf32> to vector<8x64xf32>
    %220 = arith.negf %219 : vector<8x64xf32>
    %221 = math.exp %220 : vector<8x64xf32>
    %cst_52 = arith.constant 1.000000e+00 : f32
    %222 = vector.broadcast %cst_52 : f32 to vector<8x64xf32>
    %223 = arith.addf %222, %221 : vector<8x64xf32>
    %224 = arith.divf %222, %223 : vector<8x64xf32>
    %225 = vector.extract_strided_slice %212 {offsets = [0, 128], sizes = [8, 64], strides = [1, 1]} : vector<8x256xf32> to vector<8x64xf32>
    %226 = math.tanh %225 : vector<8x64xf32>
    %227 = vector.extract_strided_slice %212 {offsets = [0, 192], sizes = [8, 64], strides = [1, 1]} : vector<8x256xf32> to vector<8x64xf32>
    %228 = arith.negf %227 : vector<8x64xf32>
    %229 = math.exp %228 : vector<8x64xf32>
    %cst_53 = arith.constant 1.000000e+00 : f32
    %230 = vector.broadcast %cst_53 : f32 to vector<8x64xf32>
    %231 = arith.addf %230, %229 : vector<8x64xf32>
    %232 = arith.divf %230, %231 : vector<8x64xf32>
    %233 = arith.mulf %224, %206 : vector<8x64xf32>
    %234 = arith.mulf %218, %226 : vector<8x64xf32>
    %235 = arith.addf %233, %234 : vector<8x64xf32>
    %236 = math.tanh %235 : vector<8x64xf32>
    %237 = arith.mulf %232, %236 : vector<8x64xf32>
    %c0_54 = arith.constant 0 : index
    %c0_55 = arith.constant 0 : index
    %238 = vector.load %arg6[%c0_54, %c0_55] : memref<8x64xf32, #tpu.memory_space<vmem>>, vector<8x64xf32>
    tpu.vector_store %arg6[%c0_54, %c0_55], %237 {strides = array<i32>} : memref<8x64xf32, #tpu.memory_space<vmem>>, vector<8x64xf32>,
    %c0_56 = arith.constant 0 : index
    %c0_57 = arith.constant 0 : index
    %239 = vector.load %arg7[%c0_56, %c0_57] : memref<8x64xf32, #tpu.memory_space<vmem>>, vector<8x64xf32>
    tpu.vector_store %arg7[%c0_56, %c0_57], %235 {strides = array<i32>} : memref<8x64xf32, #tpu.memory_space<vmem>>, vector<8x64xf32>,
    %c0_i32_58 = arith.constant 0 : i32
    %240 = arith.cmpi eq, %arg0, %c0_i32_58 : i32
    %241 = arith.extui %240 : i1 to i32
    %c0_i32_59 = arith.constant 0 : i32
    %242 = arith.cmpi ne, %241, %c0_i32_59 : i32
    scf.if %242 {
      %c0_60 = arith.constant 0 : index
      %c0_61 = arith.constant 0 : index
      %243 = vector.load %arg3[%c0_60, %c0_61] : memref<64x2xf32, #tpu.memory_space<vmem>>, vector<64x2xf32>
      %cst_62 = arith.constant dense<0.000000e+00> : vector<8x2xf32>
      %244 = tpu.matmul %237, %243, %cst_62 {dimension_numbers = #tpu.dot_dimension_numbers<[1], [0], [0], [1], [0, 0, 1, 1], [], []>} : vector<8x64xf32>, vector<64x2xf32>, vector<8x2xf32> -> vector<8x2xf32>
      %c0_63 = arith.constant 0 : index
      %c0_64 = arith.constant 0 : index
      %245 = vector.load %arg4[%c0_63, %c0_64] : memref<1x2xf32, #tpu.memory_space<vmem>>, vector<1x2xf32>
      %246 = vector.broadcast %245 : vector<1x2xf32> to vector<8x2xf32>
      %247 = arith.addf %244, %246 : vector<8x2xf32>
      %c0_65 = arith.constant 0 : index
      %c0_66 = arith.constant 0 : index
      %248 = vector.load %arg5[%c0_65, %c0_66] : memref<8x2xf32, #tpu.memory_space<vmem>>, vector<8x2xf32>
      tpu.vector_store %arg5[%c0_65, %c0_66], %247 {strides = array<i32>} : memref<8x2xf32, #tpu.memory_space<vmem>>, vector<8x2xf32>,
    } else {
    }
    return
  }
  func.func @transform_0(%arg0: i32) -> (i32, i32, i32) {
    %c0_i32 = arith.constant 0 : i32
    %c0_i32_0 = arith.constant 0 : i32
    %c0_i32_1 = arith.constant 0 : i32
    return %arg0, %c0_i32, %c0_i32_0 : i32, i32, i32
  }
  func.func @transform_1(%arg0: i32) -> (i32, i32) {
    %c0_i32 = arith.constant 0 : i32
    %c0_i32_0 = arith.constant 0 : i32
    %c0_i32_1 = arith.constant 0 : i32
    return %c0_i32, %c0_i32_0 : i32, i32
  }
  func.func @transform_2(%arg0: i32) -> (i32, i32) {
    %c0_i32 = arith.constant 0 : i32
    %c0_i32_0 = arith.constant 0 : i32
    %c0_i32_1 = arith.constant 0 : i32
    return %c0_i32, %c0_i32_0 : i32, i32
  }
  func.func @transform_3(%arg0: i32) -> (i32, i32) {
    %c0_i32 = arith.constant 0 : i32
    %c0_i32_0 = arith.constant 0 : i32
    %c0_i32_1 = arith.constant 0 : i32
    return %c0_i32, %c0_i32_0 : i32, i32
  }
  func.func @transform_4(%arg0: i32) -> (i32, i32) {
    %c0_i32 = arith.constant 0 : i32
    %c0_i32_0 = arith.constant 0 : i32
    %c0_i32_1 = arith.constant 0 : i32
    return %c0_i32, %c0_i32_0 : i32, i32
  }
}

</mosaic_0001>

<llo_original>
// kernel: tpu_custom_call.1
$region0: #{tpu_custom_call.1}
  #allocation0 [shape = 'u32[]', space=smem, size = 0x4, offset = 0x4, fixed_abs, tag = 'smem constant byte address 0x4 - core index']
  #allocation1 [shape = 'u32[144,128]{1,0:T(1,128)}', space=vmem, size = 0x12000, scoped, tag = 'internal scratch']
  #allocation2 [shape = 'f32[8,64]{1,0:T(8,128)}', space=vmem, size = 0x1000, scoped, tag = 'scratch operand']
  #allocation3 [shape = 'f32[8,64]{1,0:T(8,128)}', space=vmem, size = 0x1000, scoped, tag = 'scratch operand']
  %s0 = inlined_call_operand.hbm [shape: f32[8,8,256], index: 0, kind: input, shape index: {}]
  %s1 = inlined_call_operand.hbm [shape: f32[64,256], index: 1, kind: input, shape index: {}]
  %s2 = inlined_call_operand.vmem [shape: f32[64,2], index: 2, kind: input, shape index: {}]
  %s3 = inlined_call_operand.vmem [shape: f32[1,2], index: 3, kind: input, shape index: {}]
  %s4 = inlined_call_operand.vmem [shape: f32[8,2], index: 4, kind: output, shape index: {}]
  %s5 = sld [smem:[#allocation0]]
  $region42: #{tpu_custom_call.1} parent=0
    _
  %s7 = ssub.s32 1, %s5
  %s8 = scalar_select 0, %s7, %s5
  $region1: #{tpu_custom_call.1} parent=0
    #allocation4 [shape = 'u8[65536]{0}', space=vmem, size = 0x10000, scoped, tag = 'input window, operand 0, single buffered']
    #allocation5 [shape = 's32[1]{0}', space=sflag, size = 0x4, scoped, tag = 'scoped memory for tpu_custom_call.1']
    #allocation6 [shape = 'u8[65536]{0}', space=vmem, size = 0x10000, scoped, tag = 'input window, operand 1, single buffered']
    #allocation7 [shape = 's32[1]{0}', space=sflag, size = 0x4, scoped, tag = 'scoped memory for tpu_custom_call.1']
    %9 = vsyncpa [#allocation5], 0
    %10 = vsyncpa [#allocation7], 0
    // Predicated region
    $region2: #{tpu_custom_call.1} parent=1 // pred_check
      _
    $region3: #{tpu_custom_call.1} parent=1 // pred_check_branch
      %12 = sbr.rel (0) target = $region5
    $region4: #{tpu_custom_call.1} parent=1 // pred_region
      %s14 = ssub.s32 2048, 2048
      %15 = vsyncadd [#allocation5], %s14
      %s16 = sshll.u32 [#allocation4], 4
      %s17 = int_to_ptr.vmem [resolvable:$true] %s16
      %22 = dma.hbm_to_vmem [thread:$0]  %s0, 2048, %s17, [#allocation5], 256, 256, 16
    $region5: #{tpu_custom_call.1} parent=1 // pred_fallthru
      _
    // Predicated region
    $region6: #{tpu_custom_call.1} parent=1 // pred_check
      _
    $region7: #{tpu_custom_call.1} parent=1 // pred_check_branch
      %24 = sbr.rel (0) target = $region9
    $region8: #{tpu_custom_call.1} parent=1 // pred_region
      %s26 = ssub.s32 2048, 2048
      %27 = vsyncadd [#allocation7], %s26
      %s28 = sshll.u32 [#allocation6], 4
      %s29 = int_to_ptr.vmem [resolvable:$true] %s28
      %34 = dma.hbm_to_vmem [thread:$0]  %s1, 2048, %s29, [#allocation7], 256, 256, 16
    $region9: #{tpu_custom_call.1} parent=1 // pred_fallthru
      _
    // Predicated region
    $region10: #{tpu_custom_call.1} parent=1 // pred_check
      _
    $region11: #{tpu_custom_call.1} parent=1 // pred_check_branch
      %36 = sbr.rel (0) target = $region13
    $region12: #{tpu_custom_call.1} parent=1 // pred_region
      _
    $region13: #{tpu_custom_call.1} parent=1 // pred_fallthru
      _
    // Predicated region
    $region14: #{tpu_custom_call.1} parent=1 // pred_check
      _
    $region15: #{tpu_custom_call.1} parent=1 // pred_check_branch
      %38 = sbr.rel (0) target = $region17
    $region16: #{tpu_custom_call.1} parent=1 // pred_region
      _
    $region17: #{tpu_custom_call.1} parent=1 // pred_fallthru
      _
    // Predicated region
    $region18: #{tpu_custom_call.1} parent=1 // pred_check
      _
    $region19: #{tpu_custom_call.1} parent=1 // pred_check_branch
      %40 = sbr.rel (0) target = $region21
    $region20: #{tpu_custom_call.1} parent=1 // pred_region
      %41 = dma.done [#allocation5], 2048
    $region21: #{tpu_custom_call.1} parent=1 // pred_fallthru
      _
    // Predicated region
    $region22: #{tpu_custom_call.1} parent=1 // pred_check
      _
    $region23: #{tpu_custom_call.1} parent=1 // pred_check_branch
      %43 = sbr.rel (0) target = $region25
    $region24: #{tpu_custom_call.1} parent=1 // pred_region
      %44 = dma.done [#allocation7], 2048
    $region25: #{tpu_custom_call.1} parent=1 // pred_fallthru
      _
    %p45 = scmp.eq.s32.totalorder 0, 0
    // Predicated region
    $region26: #{tpu_custom_call.1} parent=1 // pred_check
      %p46 = pneg %p45
    $region27: #{tpu_custom_call.1} parent=1 // pred_check_branch
      %48 = sbr.rel (%p46) target = $region29
    $region28: #{tpu_custom_call.1} parent=1 // pred_region
      %vm49 = vcmask 523264
      %50 = vst.msk [vmem:[#allocation2] sm:$0xff] %vm49, 0.0
      %51 = vst.msk [vmem:[#allocation3] sm:$0xff] %vm49, 0.0
    $region29: #{tpu_custom_call.1} parent=1 // pred_fallthru
      _
    %v52 = vld [vmem:[#allocation6] sm:$0xff]
    %v53 = vld [vmem:[#allocation6 + $0x8] sm:$0xff]
    %v54 = vld [vmem:[#allocation6 + $0x10] sm:$0xff]
    %v55 = vld [vmem:[#allocation6 + $0x18] sm:$0xff]
    %v56 = vld [vmem:[#allocation6 + $0x20] sm:$0xff]
    %v57 = vld [vmem:[#allocation6 + $0x28] sm:$0xff]
    %v58 = vld [vmem:[#allocation6 + $0x30] sm:$0xff]
    %v59 = vld [vmem:[#allocation6 + $0x38] sm:$0xff]
    %v60 = vld [vmem:[#allocation6 + $0x40] sm:$0xff]
    %v61 = vld [vmem:[#allocation6 + $0x48] sm:$0xff]
    %v62 = vld [vmem:[#allocation6 + $0x50] sm:$0xff]
    %v63 = vld [vmem:[#allocation6 + $0x58] sm:$0xff]
    %v64 = vld [vmem:[#allocation6 + $0x60] sm:$0xff]
    %v65 = vld [vmem:[#allocation6 + $0x68] sm:$0xff]
    %v66 = vld [vmem:[#allocation6 + $0x70] sm:$0xff]
    %v67 = vld [vmem:[#allocation6 + $0x78] sm:$0xff]
    %v68 = vld [vmem:[#allocation2] sm:$0xff]
    %v69 = vld [vmem:[#allocation3] sm:$0xff]
    %v70 = vld [vmem:[#allocation4] sm:$0xff]
    %v71 = vld [vmem:[#allocation4 + $0x8] sm:$0xff]
    %vm72 = vcmask 523264
    %v74 = vsel %vm72, %v68, 0
    %76 = vmatprep.subr.mxu0 %v53
    %77 = vmatpush1.msra.mxu0 %v52
    %78 = vmatprep.subr.mxu0 %v55
    %79 = vmatpush1.msra.mxu0 %v54
    %80 = vmatprep.subr.mxu0 %v57
    %81 = vmatpush1.msra.mxu0 %v56
    %82 = vmatprep.subr.mxu0 %v59
    %83 = vmatpush1.msra.mxu0 %v58
    %84 = vmatprep.subr.mxu0 %v61
    %85 = vmatpush1.msra.mxu0 %v60
    %86 = vmatprep.subr.mxu0 %v63
    %87 = vmatpush1.msra.mxu0 %v62
    %88 = vmatprep.subr.mxu0 %v65
    %89 = vmatpush1.msra.mxu0 %v64
    %90 = vmatprep.subr.mxu0 %v67
    %91 = vmatpush1.msra.mxu0 %v66
    %92 = vmatprep.subr.mxu0 0.0
    %93 = vmatpush1.msra.mxu0 0.0
    %94 = vmatprep.subr.mxu0 0.0
    %95 = vmatpush1.msra.mxu0 0.0
    %96 = vmatprep.subr.mxu0 0.0
    %97 = vmatpush1.msra.mxu0 0.0
    %98 = vmatprep.subr.mxu0 0.0
    %99 = vmatpush1.msra.mxu0 0.0
    %100 = vmatprep.subr.mxu0 0.0
    %101 = vmatpush1.msra.mxu0 0.0
    %102 = vmatprep.subr.mxu0 0.0
    %103 = vmatpush1.msra.mxu0 0.0
    %104 = vmatprep.subr.mxu0 0.0
    %105 = vmatpush1.msra.mxu0 0.0
    %106 = vmatprep.subr.mxu0 0.0
    %107 = vmatpush1.msra.mxu0 0.0
    %108 = vmatprep.subr.mxu0 0.0
    %109 = vmatpush1.msra.mxu0 0.0
    %110 = vmatprep.subr.mxu0 0.0
    %111 = vmatpush1.msra.mxu0 0.0
    %112 = vmatprep.subr.mxu0 0.0
    %113 = vmatpush1.msra.mxu0 0.0
    %114 = vmatprep.subr.mxu0 0.0
    %115 = vmatpush1.msra.mxu0 0.0
    %116 = vmatprep.subr.mxu0 0.0
    %117 = vmatpush1.msra.mxu0 0.0
    %118 = vmatprep.subr.mxu0 0.0
    %119 = vmatpush1.msra.mxu0 0.0
    %120 = vmatprep.subr.mxu0 0.0
    %121 = vmatpush1.msra.mxu0 0.0
    %122 = vmatprep.subr.mxu0 0.0
    %123 = vmatpush1.msra.mxu0 0.0
    %124 = vmatprep.subr.mxu0 0.0
    %125 = vmatpush1.msra.mxu0 0.0
    %126 = vmatprep.subr.mxu0 0.0
    %127 = vmatpush1.msra.mxu0 0.0
    %128 = vmatprep.subr.mxu0 0.0
    %129 = vmatpush1.msra.mxu0 0.0
    %130 = vmatprep.subr.mxu0 0.0
    %131 = vmatpush1.msra.mxu0 0.0
    %132 = vmatprep.subr.mxu0 0.0
    %133 = vmatpush1.msra.mxu0 0.0
    %134 = vmatprep.subr.mxu0 0.0
    %135 = vmatpush1.msra.mxu0 0.0
    %136 = vmatprep.subr.mxu0 0.0
    %137 = vmatpush1.msra.mxu0 0.0
    %138 = vmatprep.subr.mxu0 0.0
    %139 = vmatpush1.msra.mxu0 0.0
    %140 = vmatprep.mubr.f32.mxu0 0.0
    %141 = vmatmul.mubr.f32.gmra.mrb[0].mxu0 %v74
    %v142 = vpop.f32.mrb[0].mxu0
    %v143 = vadd.f32 0.0, %v142
    %v144 = vpop.f32.mrb[0].mxu0
    %v145 = vadd.f32 0.0, %v144
    %146 = vdwg.mxu0
    %v147 = vadd.f32 %v70, %v143
    %v148 = vadd.f32 %v71, %v145
    %v149 = vxor.u32 %v147, 2147483648
    %v150 = vmul.f32 %v149, 1.442695
    %v151 = vpow.pop %v150
    %v152 = vadd.f32 %v151, 1.0
    %v153 = vrcp.pop %v152
    %v154 = vmul.f32 1.0, %v153
    %v155 = vtanh.pop %v148
    %v156 = vxor.u32 %v148, 2147483648
    %v157 = vmul.f32 %v156, 1.442695
    %v158 = vpow.pop %v157
    %v159 = vadd.f32 %v158, 1.0
    %v160 = vrcp.pop %v159
    %v161 = vmul.f32 1.0, %v160
    %163 = vrot.lane.b32.xlu0 %v69, 64
    %v164 = vpop.permute.xlu0 %163
    %v166 = vmul.f32 %v154, %v164
    %v167 = vmul.f32 %v154, %v155
    %169 = vrot.lane.b32.xlu0 %v167, 64
    %v170 = vpop.permute.xlu0 %169
    %v172 = vadd.f32 %v166, %v170
    %v173 = vtanh.pop %v172
    %v174 = vmul.f32 %v161, %v173
    %s175 = scalar_lea.vmem [#allocation4], 16
    %v176 = vld [vmem:[%s175] sm:$0xff]
    %v177 = vld [vmem:[%s175 + $0x8] sm:$0xff]
    %179 = vrot.lane.b32.xlu0 %v174, 64
    %v180 = vpop.permute.xlu0 %179
    %v181 = vsel %vm72, %v180, 0
    %183 = vmatprep.subr.mxu0 %v53
    %184 = vmatpush1.msra.mxu0 %v52
    %185 = vmatprep.subr.mxu0 %v55
    %186 = vmatpush1.msra.mxu0 %v54
    %187 = vmatprep.subr.mxu0 %v57
    %188 = vmatpush1.msra.mxu0 %v56
    %189 = vmatprep.subr.mxu0 %v59
    %190 = vmatpush1.msra.mxu0 %v58
    %191 = vmatprep.subr.mxu0 %v61
    %192 = vmatpush1.msra.mxu0 %v60
    %193 = vmatprep.subr.mxu0 %v63
    %194 = vmatpush1.msra.mxu0 %v62
    %195 = vmatprep.subr.mxu0 %v65
    %196 = vmatpush1.msra.mxu0 %v64
    %197 = vmatprep.subr.mxu0 %v67
    %198 = vmatpush1.msra.mxu0 %v66
    %199 = vmatprep.subr.mxu0 0.0
    %200 = vmatpush1.msra.mxu0 0.0
    %201 = vmatprep.subr.mxu0 0.0
    %202 = vmatpush1.msra.mxu0 0.0
    %203 = vmatprep.subr.mxu0 0.0
    %204 = vmatpush1.msra.mxu0 0.0
    %205 = vmatprep.subr.mxu0 0.0
    %206 = vmatpush1.msra.mxu0 0.0
    %207 = vmatprep.subr.mxu0 0.0
    %208 = vmatpush1.msra.mxu0 0.0
    %209 = vmatprep.subr.mxu0 0.0
    %210 = vmatpush1.msra.mxu0 0.0
    %211 = vmatprep.subr.mxu0 0.0
    %212 = vmatpush1.msra.mxu0 0.0
    %213 = vmatprep.subr.mxu0 0.0
    %214 = vmatpush1.msra.mxu0 0.0
    %215 = vmatprep.subr.mxu0 0.0
    %216 = vmatpush1.msra.mxu0 0.0
    %217 = vmatprep.subr.mxu0 0.0
    %218 = vmatpush1.msra.mxu0 0.0
    %219 = vmatprep.subr.mxu0 0.0
    %220 = vmatpush1.msra.mxu0 0.0
    %221 = vmatprep.subr.mxu0 0.0
    %222 = vmatpush1.msra.mxu0 0.0
    %223 = vmatprep.subr.mxu0 0.0
    %224 = vmatpush1.msra.mxu0 0.0
    %225 = vmatprep.subr.mxu0 0.0
    %226 = vmatpush1.msra.mxu0 0.0
    %227 = vmatprep.subr.mxu0 0.0
    %228 = vmatpush1.msra.mxu0 0.0
    %229 = vmatprep.subr.mxu0 0.0
    %230 = vmatpush1.msra.mxu0 0.0
    %231 = vmatprep.subr.mxu0 0.0
    %232 = vmatpush1.msra.mxu0 0.0
    %233 = vmatprep.subr.mxu0 0.0
    %234 = vmatpush1.msra.mxu0 0.0
    %235 = vmatprep.subr.mxu0 0.0
    %236 = vmatpush1.msra.mxu0 0.0
    %237 = vmatprep.subr.mxu0 0.0
    %238 = vmatpush1.msra.mxu0 0.0
    %239 = vmatprep.subr.mxu0 0.0
    %240 = vmatpush1.msra.mxu0 0.0
    %241 = vmatprep.subr.mxu0 0.0
    %242 = vmatpush1.msra.mxu0 0.0
    %243 = vmatprep.subr.mxu0 0.0
    %244 = vmatpush1.msra.mxu0 0.0
    %245 = vmatprep.subr.mxu0 0.0
    %246 = vmatpush1.msra.mxu0 0.0
    %247 = vmatprep.mubr.f32.mxu0 0.0
    %248 = vmatmul.mubr.f32.gmra.mrb[0].mxu0 %v181
    %v249 = vpop.f32.mrb[0].mxu0
    %v250 = vadd.f32 0.0, %v249
    %v251 = vpop.f32.mrb[0].mxu0
    %v252 = vadd.f32 0.0, %v251
    %253 = vdwg.mxu0
    %v254 = vadd.f32 %v176, %v250
    %v255 = vadd.f32 %v177, %v252
    %v256 = vxor.u32 %v254, 2147483648
    %v257 = vmul.f32 %v256, 1.442695
    %v258 = vpow.pop %v257
    %v259 = vadd.f32 %v258, 1.0
    %v260 = vrcp.pop %v259
    %v261 = vmul.f32 1.0, %v260
    %v262 = vtanh.pop %v255
    %v263 = vxor.u32 %v255, 2147483648
    %v264 = vmul.f32 %v263, 1.442695
    %v265 = vpow.pop %v264
    %v266 = vadd.f32 %v265, 1.0
    %v267 = vrcp.pop %v266
    %v268 = vmul.f32 1.0, %v267
    %v269 = vmul.f32 %v261, %v172
    %v270 = vmul.f32 %v261, %v262
    %272 = vrot.lane.b32.xlu0 %v270, 64
    %v273 = vpop.permute.xlu0 %272
    %v275 = vadd.f32 %v269, %v273
    %v276 = vtanh.pop %v275
    %v277 = vmul.f32 %v268, %v276
    %s278 = scalar_lea.vmem [#allocation4], 32
    %v279 = vld [vmem:[%s278] sm:$0xff]
    %v280 = vld [vmem:[%s278 + $0x8] sm:$0xff]
    %282 = vrot.lane.b32.xlu0 %v277, 64
    %v283 = vpop.permute.xlu0 %282
    %v284 = vsel %vm72, %v283, 0
    %286 = vmatprep.subr.mxu0 %v53
    %287 = vmatpush1.msra.mxu0 %v52
    %288 = vmatprep.subr.mxu0 %v55
    %289 = vmatpush1.msra.mxu0 %v54
    %290 = vmatprep.subr.mxu0 %v57
    %291 = vmatpush1.msra.mxu0 %v56
    %292 = vmatprep.subr.mxu0 %v59
    %293 = vmatpush1.msra.mxu0 %v58
    %294 = vmatprep.subr.mxu0 %v61
    %295 = vmatpush1.msra.mxu0 %v60
    %296 = vmatprep.subr.mxu0 %v63
    %297 = vmatpush1.msra.mxu0 %v62
    %298 = vmatprep.subr.mxu0 %v65
    %299 = vmatpush1.msra.mxu0 %v64
    %300 = vmatprep.subr.mxu0 %v67
    %301 = vmatpush1.msra.mxu0 %v66
    %302 = vmatprep.subr.mxu0 0.0
    %303 = vmatpush1.msra.mxu0 0.0
    %304 = vmatprep.subr.mxu0 0.0
    %305 = vmatpush1.msra.mxu0 0.0
    %306 = vmatprep.subr.mxu0 0.0
    %307 = vmatpush1.msra.mxu0 0.0
    %308 = vmatprep.subr.mxu0 0.0
    %309 = vmatpush1.msra.mxu0 0.0
    %310 = vmatprep.subr.mxu0 0.0
    %311 = vmatpush1.msra.mxu0 0.0
    %312 = vmatprep.subr.mxu0 0.0
    %313 = vmatpush1.msra.mxu0 0.0
    %314 = vmatprep.subr.mxu0 0.0
    %315 = vmatpush1.msra.mxu0 0.0
    %316 = vmatprep.subr.mxu0 0.0
    %317 = vmatpush1.msra.mxu0 0.0
    %318 = vmatprep.subr.mxu0 0.0
    %319 = vmatpush1.msra.mxu0 0.0
    %320 = vmatprep.subr.mxu0 0.0
    %321 = vmatpush1.msra.mxu0 0.0
    %322 = vmatprep.subr.mxu0 0.0
    %323 = vmatpush1.msra.mxu0 0.0
    %324 = vmatprep.subr.mxu0 0.0
    %325 = vmatpush1.msra.mxu0 0.0
    %326 = vmatprep.subr.mxu0 0.0
    %327 = vmatpush1.msra.mxu0 0.0
    %328 = vmatprep.subr.mxu0 0.0
    %329 = vmatpush1.msra.mxu0 0.0
    %330 = vmatprep.subr.mxu0 0.0
    %331 = vmatpush1.msra.mxu0 0.0
    %332 = vmatprep.subr.mxu0 0.0
    %333 = vmatpush1.msra.mxu0 0.0
    %334 = vmatprep.subr.mxu0 0.0
    %335 = vmatpush1.msra.mxu0 0.0
    %336 = vmatprep.subr.mxu0 0.0
    %337 = vmatpush1.msra.mxu0 0.0
    %338 = vmatprep.subr.mxu0 0.0
    %339 = vmatpush1.msra.mxu0 0.0
    %340 = vmatprep.subr.mxu0 0.0
    %341 = vmatpush1.msra.mxu0 0.0
    %342 = vmatprep.subr.mxu0 0.0
    %343 = vmatpush1.msra.mxu0 0.0
    %344 = vmatprep.subr.mxu0 0.0
    %345 = vmatpush1.msra.mxu0 0.0
    %346 = vmatprep.subr.mxu0 0.0
    %347 = vmatpush1.msra.mxu0 0.0
    %348 = vmatprep.subr.mxu0 0.0
    %349 = vmatpush1.msra.mxu0 0.0
    %350 = vmatprep.mubr.f32.mxu0 0.0
    %351 = vmatmul.mubr.f32.gmra.mrb[0].mxu0 %v284
    %v352 = vpop.f32.mrb[0].mxu0
    %v353 = vadd.f32 0.0, %v352
    %v354 = vpop.f32.mrb[0].mxu0
    %v355 = vadd.f32 0.0, %v354
    %356 = vdwg.mxu0
    %v357 = vadd.f32 %v279, %v353
    %v358 = vadd.f32 %v280, %v355
    %v359 = vxor.u32 %v357, 2147483648
    %v360 = vmul.f32 %v359, 1.442695
    %v361 = vpow.pop %v360
    %v362 = vadd.f32 %v361, 1.0
    %v363 = vrcp.pop %v362
    %v364 = vmul.f32 1.0, %v363
    %v365 = vtanh.pop %v358
    %v366 = vxor.u32 %v358, 2147483648
    %v367 = vmul.f32 %v366, 1.442695
    %v368 = vpow.pop %v367
    %v369 = vadd.f32 %v368, 1.0
    %v370 = vrcp.pop %v369
    %v371 = vmul.f32 1.0, %v370
    %v372 = vmul.f32 %v364, %v275
    %v373 = vmul.f32 %v364, %v365
    %375 = vrot.lane.b32.xlu0 %v373, 64
    %v376 = vpop.permute.xlu0 %375
    %v378 = vadd.f32 %v372, %v376
    %v379 = vtanh.pop %v378
    %v380 = vmul.f32 %v371, %v379
    %s381 = scalar_lea.vmem [#allocation4], 48
    %v382 = vld [vmem:[%s381] sm:$0xff]
    %v383 = vld [vmem:[%s381 + $0x8] sm:$0xff]
    %385 = vrot.lane.b32.xlu0 %v380, 64
    %v386 = vpop.permute.xlu0 %385
    %v387 = vsel %vm72, %v386, 0
    %389 = vmatprep.subr.mxu0 %v53
    %390 = vmatpush1.msra.mxu0 %v52
    %391 = vmatprep.subr.mxu0 %v55
    %392 = vmatpush1.msra.mxu0 %v54
    %393 = vmatprep.subr.mxu0 %v57
    %394 = vmatpush1.msra.mxu0 %v56
    %395 = vmatprep.subr.mxu0 %v59
    %396 = vmatpush1.msra.mxu0 %v58
    %397 = vmatprep.subr.mxu0 %v61
    %398 = vmatpush1.msra.mxu0 %v60
    %399 = vmatprep.subr.mxu0 %v63
    %400 = vmatpush1.msra.mxu0 %v62
    %401 = vmatprep.subr.mxu0 %v65
    %402 = vmatpush1.msra.mxu0 %v64
    %403 = vmatprep.subr.mxu0 %v67
    %404 = vmatpush1.msra.mxu0 %v66
    %405 = vmatprep.subr.mxu0 0.0
    %406 = vmatpush1.msra.mxu0 0.0
    %407 = vmatprep.subr.mxu0 0.0
    %408 = vmatpush1.msra.mxu0 0.0
    %409 = vmatprep.subr.mxu0 0.0
    %410 = vmatpush1.msra.mxu0 0.0
    %411 = vmatprep.subr.mxu0 0.0
    %412 = vmatpush1.msra.mxu0 0.0
    %413 = vmatprep.subr.mxu0 0.0
    %414 = vmatpush1.msra.mxu0 0.0
    %415 = vmatprep.subr.mxu0 0.0
    %416 = vmatpush1.msra.mxu0 0.0
    %417 = vmatprep.subr.mxu0 0.0
    %418 = vmatpush1.msra.mxu0 0.0
    %419 = vmatprep.subr.mxu0 0.0
    %420 = vmatpush1.msra.mxu0 0.0
    %421 = vmatprep.subr.mxu0 0.0
    %422 = vmatpush1.msra.mxu0 0.0
    %423 = vmatprep.subr.mxu0 0.0
    %424 = vmatpush1.msra.mxu0 0.0
    %425 = vmatprep.subr.mxu0 0.0
    %426 = vmatpush1.msra.mxu0 0.0
    %427 = vmatprep.subr.mxu0 0.0
    %428 = vmatpush1.msra.mxu0 0.0
    %429 = vmatprep.subr.mxu0 0.0
    %430 = vmatpush1.msra.mxu0 0.0
    %431 = vmatprep.subr.mxu0 0.0
    %432 = vmatpush1.msra.mxu0 0.0
    %433 = vmatprep.subr.mxu0 0.0
    %434 = vmatpush1.msra.mxu0 0.0
    %435 = vmatprep.subr.mxu0 0.0
    %436 = vmatpush1.msra.mxu0 0.0
    %437 = vmatprep.subr.mxu0 0.0
    %438 = vmatpush1.msra.mxu0 0.0
    %439 = vmatprep.subr.mxu0 0.0
    %440 = vmatpush1.msra.mxu0 0.0
    %441 = vmatprep.subr.mxu0 0.0
    %442 = vmatpush1.msra.mxu0 0.0
    %443 = vmatprep.subr.mxu0 0.0
    %444 = vmatpush1.msra.mxu0 0.0
    %445 = vmatprep.subr.mxu0 0.0
    %446 = vmatpush1.msra.mxu0 0.0
    %447 = vmatprep.subr.mxu0 0.0
    %448 = vmatpush1.msra.mxu0 0.0
    %449 = vmatprep.subr.mxu0 0.0
    %450 = vmatpush1.msra.mxu0 0.0
    %451 = vmatprep.subr.mxu0 0.0
    %452 = vmatpush1.msra.mxu0 0.0
    %453 = vmatprep.mubr.f32.mxu0 0.0
    %454 = vmatmul.mubr.f32.gmra.mrb[0].mxu0 %v387
    %v455 = vpop.f32.mrb[0].mxu0
    %v456 = vadd.f32 0.0, %v455
    %v457 = vpop.f32.mrb[0].mxu0
    %v458 = vadd.f32 0.0, %v457
    %459 = vdwg.mxu0
    %v460 = vadd.f32 %v382, %v456
    %v461 = vadd.f32 %v383, %v458
    %v462 = vxor.u32 %v460, 2147483648
    %v463 = vmul.f32 %v462, 1.442695
    %v464 = vpow.pop %v463
    %v465 = vadd.f32 %v464, 1.0
    %v466 = vrcp.pop %v465
    %v467 = vmul.f32 1.0, %v466
    %v468 = vtanh.pop %v461
    %v469 = vxor.u32 %v461, 2147483648
    %v470 = vmul.f32 %v469, 1.442695
    %v471 = vpow.pop %v470
    %v472 = vadd.f32 %v471, 1.0
    %v473 = vrcp.pop %v472
    %v474 = vmul.f32 1.0, %v473
    %v475 = vmul.f32 %v467, %v378
    %v476 = vmul.f32 %v467, %v468
    %478 = vrot.lane.b32.xlu0 %v476, 64
    %v479 = vpop.permute.xlu0 %478
    %v481 = vadd.f32 %v475, %v479
    %v482 = vtanh.pop %v481
    %v483 = vmul.f32 %v474, %v482
    %s484 = scalar_lea.vmem [#allocation4], 64
    %v485 = vld [vmem:[%s484] sm:$0xff]
    %v486 = vld [vmem:[%s484 + $0x8] sm:$0xff]
    %488 = vrot.lane.b32.xlu0 %v483, 64
    %v489 = vpop.permute.xlu0 %488
    %v490 = vsel %vm72, %v489, 0
    %492 = vmatprep.subr.mxu0 %v53
    %493 = vmatpush1.msra.mxu0 %v52
    %494 = vmatprep.subr.mxu0 %v55
    %495 = vmatpush1.msra.mxu0 %v54
    %496 = vmatprep.subr.mxu0 %v57
    %497 = vmatpush1.msra.mxu0 %v56
    %498 = vmatprep.subr.mxu0 %v59
    %499 = vmatpush1.msra.mxu0 %v58
    %500 = vmatprep.subr.mxu0 %v61
    %501 = vmatpush1.msra.mxu0 %v60
    %502 = vmatprep.subr.mxu0 %v63
    %503 = vmatpush1.msra.mxu0 %v62
    %504 = vmatprep.subr.mxu0 %v65
    %505 = vmatpush1.msra.mxu0 %v64
    %506 = vmatprep.subr.mxu0 %v67
    %507 = vmatpush1.msra.mxu0 %v66
    %508 = vmatprep.subr.mxu0 0.0
    %509 = vmatpush1.msra.mxu0 0.0
    %510 = vmatprep.subr.mxu0 0.0
    %511 = vmatpush1.msra.mxu0 0.0
    %512 = vmatprep.subr.mxu0 0.0
    %513 = vmatpush1.msra.mxu0 0.0
    %514 = vmatprep.subr.mxu0 0.0
    %515 = vmatpush1.msra.mxu0 0.0
    %516 = vmatprep.subr.mxu0 0.0
    %517 = vmatpush1.msra.mxu0 0.0
    %518 = vmatprep.subr.mxu0 0.0
    %519 = vmatpush1.msra.mxu0 0.0
    %520 = vmatprep.subr.mxu0 0.0
    %521 = vmatpush1.msra.mxu0 0.0
    %522 = vmatprep.subr.mxu0 0.0
    %523 = vmatpush1.msra.mxu0 0.0
    %524 = vmatprep.subr.mxu0 0.0
    %525 = vmatpush1.msra.mxu0 0.0
    %526 = vmatprep.subr.mxu0 0.0
    %527 = vmatpush1.msra.mxu0 0.0
    %528 = vmatprep.subr.mxu0 0.0
    %529 = vmatpush1.msra.mxu0 0.0
    %530 = vmatprep.subr.mxu0 0.0
    %531 = vmatpush1.msra.mxu0 0.0
    %532 = vmatprep.subr.mxu0 0.0
    %533 = vmatpush1.msra.mxu0 0.0
    %534 = vmatprep.subr.mxu0 0.0
    %535 = vmatpush1.msra.mxu0 0.0
    %536 = vmatprep.subr.mxu0 0.0
    %537 = vmatpush1.msra.mxu0 0.0
    %538 = vmatprep.subr.mxu0 0.0
    %539 = vmatpush1.msra.mxu0 0.0
    %540 = vmatprep.subr.mxu0 0.0
    %541 = vmatpush1.msra.mxu0 0.0
    %542 = vmatprep.subr.mxu0 0.0
    %543 = vmatpush1.msra.mxu0 0.0
    %544 = vmatprep.subr.mxu0 0.0
    %545 = vmatpush1.msra.mxu0 0.0
    %546 = vmatprep.subr.mxu0 0.0
    %547 = vmatpush1.msra.mxu0 0.0
    %548 = vmatprep.subr.mxu0 0.0
    %549 = vmatpush1.msra.mxu0 0.0
    %550 = vmatprep.subr.mxu0 0.0
    %551 = vmatpush1.msra.mxu0 0.0
    %552 = vmatprep.subr.mxu0 0.0
    %553 = vmatpush1.msra.mxu0 0.0
    %554 = vmatprep.subr.mxu0 0.0
    %555 = vmatpush1.msra.mxu0 0.0
    %556 = vmatprep.mubr.f32.mxu0 0.0
    %557 = vmatmul.mubr.f32.gmra.mrb[0].mxu0 %v490
    %v558 = vpop.f32.mrb[0].mxu0
    %v559 = vadd.f32 0.0, %v558
    %v560 = vpop.f32.mrb[0].mxu0
    %v561 = vadd.f32 0.0, %v560
    %562 = vdwg.mxu0
    %v563 = vadd.f32 %v485, %v559
    %v564 = vadd.f32 %v486, %v561
    %v565 = vxor.u32 %v563, 2147483648
    %v566 = vmul.f32 %v565, 1.442695
    %v567 = vpow.pop %v566
    %v568 = vadd.f32 %v567, 1.0
    %v569 = vrcp.pop %v568
    %v570 = vmul.f32 1.0, %v569
    %v571 = vtanh.pop %v564
    %v572 = vxor.u32 %v564, 2147483648
    %v573 = vmul.f32 %v572, 1.442695
    %v574 = vpow.pop %v573
    %v575 = vadd.f32 %v574, 1.0
    %v576 = vrcp.pop %v575
    %v577 = vmul.f32 1.0, %v576
    %v578 = vmul.f32 %v570, %v481
    %v579 = vmul.f32 %v570, %v571
    %581 = vrot.lane.b32.xlu0 %v579, 64
    %v582 = vpop.permute.xlu0 %581
    %v584 = vadd.f32 %v578, %v582
    %v585 = vtanh.pop %v584
    %v586 = vmul.f32 %v577, %v585
    %s587 = scalar_lea.vmem [#allocation4], 80
    %v588 = vld [vmem:[%s587] sm:$0xff]
    %v589 = vld [vmem:[%s587 + $0x8] sm:$0xff]
    %591 = vrot.lane.b32.xlu0 %v586, 64
    %v592 = vpop.permute.xlu0 %591
    %v593 = vsel %vm72, %v592, 0
    %595 = vmatprep.subr.mxu0 %v53
    %596 = vmatpush1.msra.mxu0 %v52
    %597 = vmatprep.subr.mxu0 %v55
    %598 = vmatpush1.msra.mxu0 %v54
    %599 = vmatprep.subr.mxu0 %v57
    %600 = vmatpush1.msra.mxu0 %v56
    %601 = vmatprep.subr.mxu0 %v59
    %602 = vmatpush1.msra.mxu0 %v58
    %603 = vmatprep.subr.mxu0 %v61
    %604 = vmatpush1.msra.mxu0 %v60
    %605 = vmatprep.subr.mxu0 %v63
    %606 = vmatpush1.msra.mxu0 %v62
    %607 = vmatprep.subr.mxu0 %v65
    %608 = vmatpush1.msra.mxu0 %v64
    %609 = vmatprep.subr.mxu0 %v67
    %610 = vmatpush1.msra.mxu0 %v66
    %611 = vmatprep.subr.mxu0 0.0
    %612 = vmatpush1.msra.mxu0 0.0
    %613 = vmatprep.subr.mxu0 0.0
    %614 = vmatpush1.msra.mxu0 0.0
    %615 = vmatprep.subr.mxu0 0.0
    %616 = vmatpush1.msra.mxu0 0.0
    %617 = vmatprep.subr.mxu0 0.0
    %618 = vmatpush1.msra.mxu0 0.0
    %619 = vmatprep.subr.mxu0 0.0
    %620 = vmatpush1.msra.mxu0 0.0
    %621 = vmatprep.subr.mxu0 0.0
    %622 = vmatpush1.msra.mxu0 0.0
    %623 = vmatprep.subr.mxu0 0.0
    %624 = vmatpush1.msra.mxu0 0.0
    %625 = vmatprep.subr.mxu0 0.0
    %626 = vmatpush1.msra.mxu0 0.0
    %627 = vmatprep.subr.mxu0 0.0
    %628 = vmatpush1.msra.mxu0 0.0
    %629 = vmatprep.subr.mxu0 0.0
    %630 = vmatpush1.msra.mxu0 0.0
    %631 = vmatprep.subr.mxu0 0.0
    %632 = vmatpush1.msra.mxu0 0.0
    %633 = vmatprep.subr.mxu0 0.0
    %634 = vmatpush1.msra.mxu0 0.0
    %635 = vmatprep.subr.mxu0 0.0
    %636 = vmatpush1.msra.mxu0 0.0
    %637 = vmatprep.subr.mxu0 0.0
    %638 = vmatpush1.msra.mxu0 0.0
    %639 = vmatprep.subr.mxu0 0.0
    %640 = vmatpush1.msra.mxu0 0.0
    %641 = vmatprep.subr.mxu0 0.0
    %642 = vmatpush1.msra.mxu0 0.0
    %643 = vmatprep.subr.mxu0 0.0
    %644 = vmatpush1.msra.mxu0 0.0
    %645 = vmatprep.subr.mxu0 0.0
    %646 = vmatpush1.msra.mxu0 0.0
    %647 = vmatprep.subr.mxu0 0.0
    %648 = vmatpush1.msra.mxu0 0.0
    %649 = vmatprep.subr.mxu0 0.0
    %650 = vmatpush1.msra.mxu0 0.0
    %651 = vmatprep.subr.mxu0 0.0
    %652 = vmatpush1.msra.mxu0 0.0
    %653 = vmatprep.subr.mxu0 0.0
    %654 = vmatpush1.msra.mxu0 0.0
    %655 = vmatprep.subr.mxu0 0.0
    %656 = vmatpush1.msra.mxu0 0.0
    %657 = vmatprep.subr.mxu0 0.0
    %658 = vmatpush1.msra.mxu0 0.0
    %659 = vmatprep.mubr.f32.mxu0 0.0
    %660 = vmatmul.mubr.f32.gmra.mrb[0].mxu0 %v593
    %v661 = vpop.f32.mrb[0].mxu0
    %v662 = vadd.f32 0.0, %v661
    %v663 = vpop.f32.mrb[0].mxu0
    %v664 = vadd.f32 0.0, %v663
    %665 = vdwg.mxu0
    %v666 = vadd.f32 %v588, %v662
    %v667 = vadd.f32 %v589, %v664
    %v668 = vxor.u32 %v666, 2147483648
    %v669 = vmul.f32 %v668, 1.442695
    %v670 = vpow.pop %v669
    %v671 = vadd.f32 %v670, 1.0
    %v672 = vrcp.pop %v671
    %v673 = vmul.f32 1.0, %v672
    %v674 = vtanh.pop %v667
    %v675 = vxor.u32 %v667, 2147483648
    %v676 = vmul.f32 %v675, 1.442695
    %v677 = vpow.pop %v676
    %v678 = vadd.f32 %v677, 1.0
    %v679 = vrcp.pop %v678
    %v680 = vmul.f32 1.0, %v679
    %v681 = vmul.f32 %v673, %v584
    %v682 = vmul.f32 %v673, %v674
    %684 = vrot.lane.b32.xlu0 %v682, 64
    %v685 = vpop.permute.xlu0 %684
    %v687 = vadd.f32 %v681, %v685
    %v688 = vtanh.pop %v687
    %v689 = vmul.f32 %v680, %v688
    %s690 = scalar_lea.vmem [#allocation4], 96
    %v691 = vld [vmem:[%s690] sm:$0xff]
    %v692 = vld [vmem:[%s690 + $0x8] sm:$0xff]
    %694 = vrot.lane.b32.xlu0 %v689, 64
    %v695 = vpop.permute.xlu0 %694
    %v696 = vsel %vm72, %v695, 0
    %698 = vmatprep.subr.mxu0 %v53
    %699 = vmatpush1.msra.mxu0 %v52
    %700 = vmatprep.subr.mxu0 %v55
    %701 = vmatpush1.msra.mxu0 %v54
    %702 = vmatprep.subr.mxu0 %v57
    %703 = vmatpush1.msra.mxu0 %v56
    %704 = vmatprep.subr.mxu0 %v59
    %705 = vmatpush1.msra.mxu0 %v58
    %706 = vmatprep.subr.mxu0 %v61
    %707 = vmatpush1.msra.mxu0 %v60
    %708 = vmatprep.subr.mxu0 %v63
    %709 = vmatpush1.msra.mxu0 %v62
    %710 = vmatprep.subr.mxu0 %v65
    %711 = vmatpush1.msra.mxu0 %v64
    %712 = vmatprep.subr.mxu0 %v67
    %713 = vmatpush1.msra.mxu0 %v66
    %714 = vmatprep.subr.mxu0 0.0
    %715 = vmatpush1.msra.mxu0 0.0
    %716 = vmatprep.subr.mxu0 0.0
    %717 = vmatpush1.msra.mxu0 0.0
    %718 = vmatprep.subr.mxu0 0.0
    %719 = vmatpush1.msra.mxu0 0.0
    %720 = vmatprep.subr.mxu0 0.0
    %721 = vmatpush1.msra.mxu0 0.0
    %722 = vmatprep.subr.mxu0 0.0
    %723 = vmatpush1.msra.mxu0 0.0
    %724 = vmatprep.subr.mxu0 0.0
    %725 = vmatpush1.msra.mxu0 0.0
    %726 = vmatprep.subr.mxu0 0.0
    %727 = vmatpush1.msra.mxu0 0.0
    %728 = vmatprep.subr.mxu0 0.0
    %729 = vmatpush1.msra.mxu0 0.0
    %730 = vmatprep.subr.mxu0 0.0
    %731 = vmatpush1.msra.mxu0 0.0
    %732 = vmatprep.subr.mxu0 0.0
    %733 = vmatpush1.msra.mxu0 0.0
    %734 = vmatprep.subr.mxu0 0.0
    %735 = vmatpush1.msra.mxu0 0.0
    %736 = vmatprep.subr.mxu0 0.0
    %737 = vmatpush1.msra.mxu0 0.0
    %738 = vmatprep.subr.mxu0 0.0
    %739 = vmatpush1.msra.mxu0 0.0
    %740 = vmatprep.subr.mxu0 0.0
    %741 = vmatpush1.msra.mxu0 0.0
    %742 = vmatprep.subr.mxu0 0.0
    %743 = vmatpush1.msra.mxu0 0.0
    %744 = vmatprep.subr.mxu0 0.0
    %745 = vmatpush1.msra.mxu0 0.0
    %746 = vmatprep.subr.mxu0 0.0
    %747 = vmatpush1.msra.mxu0 0.0
    %748 = vmatprep.subr.mxu0 0.0
    %749 = vmatpush1.msra.mxu0 0.0
    %750 = vmatprep.subr.mxu0 0.0
    %751 = vmatpush1.msra.mxu0 0.0
    %752 = vmatprep.subr.mxu0 0.0
    %753 = vmatpush1.msra.mxu0 0.0
    %754 = vmatprep.subr.mxu0 0.0
    %755 = vmatpush1.msra.mxu0 0.0
    %756 = vmatprep.subr.mxu0 0.0
    %757 = vmatpush1.msra.mxu0 0.0
    %758 = vmatprep.subr.mxu0 0.0
    %759 = vmatpush1.msra.mxu0 0.0
    %760 = vmatprep.subr.mxu0 0.0
    %761 = vmatpush1.msra.mxu0 0.0
    %762 = vmatprep.mubr.f32.mxu0 0.0
    %763 = vmatmul.mubr.f32.gmra.mrb[0].mxu0 %v696
    %v764 = vpop.f32.mrb[0].mxu0
    %v765 = vadd.f32 0.0, %v764
    %v766 = vpop.f32.mrb[0].mxu0
    %v767 = vadd.f32 0.0, %v766
    %768 = vdwg.mxu0
    %v769 = vadd.f32 %v691, %v765
    %v770 = vadd.f32 %v692, %v767
    %v771 = vxor.u32 %v769, 2147483648
    %v772 = vmul.f32 %v771, 1.442695
    %v773 = vpow.pop %v772
    %v774 = vadd.f32 %v773, 1.0
    %v775 = vrcp.pop %v774
    %v776 = vmul.f32 1.0, %v775
    %v777 = vtanh.pop %v770
    %v778 = vxor.u32 %v770, 2147483648
    %v779 = vmul.f32 %v778, 1.442695
    %v780 = vpow.pop %v779
    %v781 = vadd.f32 %v780, 1.0
    %v782 = vrcp.pop %v781
    %v783 = vmul.f32 1.0, %v782
    %v784 = vmul.f32 %v776, %v687
    %v785 = vmul.f32 %v776, %v777
    %787 = vrot.lane.b32.xlu0 %v785, 64
    %v788 = vpop.permute.xlu0 %787
    %v790 = vadd.f32 %v784, %v788
    %v791 = vtanh.pop %v790
    %v792 = vmul.f32 %v783, %v791
    %s793 = scalar_lea.vmem [#allocation4], 112
    %v794 = vld [vmem:[%s793] sm:$0xff]
    %v795 = vld [vmem:[%s793 + $0x8] sm:$0xff]
    %797 = vrot.lane.b32.xlu0 %v792, 64
    %v798 = vpop.permute.xlu0 %797
    %v799 = vsel %vm72, %v798, 0
    %801 = vmatprep.subr.mxu0 %v53
    %802 = vmatpush1.msra.mxu0 %v52
    %803 = vmatprep.subr.mxu0 %v55
    %804 = vmatpush1.msra.mxu0 %v54
    %805 = vmatprep.subr.mxu0 %v57
    %806 = vmatpush1.msra.mxu0 %v56
    %807 = vmatprep.subr.mxu0 %v59
    %808 = vmatpush1.msra.mxu0 %v58
    %809 = vmatprep.subr.mxu0 %v61
    %810 = vmatpush1.msra.mxu0 %v60
    %811 = vmatprep.subr.mxu0 %v63
    %812 = vmatpush1.msra.mxu0 %v62
    %813 = vmatprep.subr.mxu0 %v65
    %814 = vmatpush1.msra.mxu0 %v64
    %815 = vmatprep.subr.mxu0 %v67
    %816 = vmatpush1.msra.mxu0 %v66
    %817 = vmatprep.subr.mxu0 0.0
    %818 = vmatpush1.msra.mxu0 0.0
    %819 = vmatprep.subr.mxu0 0.0
    %820 = vmatpush1.msra.mxu0 0.0
    %821 = vmatprep.subr.mxu0 0.0
    %822 = vmatpush1.msra.mxu0 0.0
    %823 = vmatprep.subr.mxu0 0.0
    %824 = vmatpush1.msra.mxu0 0.0
    %825 = vmatprep.subr.mxu0 0.0
    %826 = vmatpush1.msra.mxu0 0.0
    %827 = vmatprep.subr.mxu0 0.0
    %828 = vmatpush1.msra.mxu0 0.0
    %829 = vmatprep.subr.mxu0 0.0
    %830 = vmatpush1.msra.mxu0 0.0
    %831 = vmatprep.subr.mxu0 0.0
    %832 = vmatpush1.msra.mxu0 0.0
    %833 = vmatprep.subr.mxu0 0.0
    %834 = vmatpush1.msra.mxu0 0.0
    %835 = vmatprep.subr.mxu0 0.0
    %836 = vmatpush1.msra.mxu0 0.0
    %837 = vmatprep.subr.mxu0 0.0
    %838 = vmatpush1.msra.mxu0 0.0
    %839 = vmatprep.subr.mxu0 0.0
    %840 = vmatpush1.msra.mxu0 0.0
    %841 = vmatprep.subr.mxu0 0.0
    %842 = vmatpush1.msra.mxu0 0.0
    %843 = vmatprep.subr.mxu0 0.0
    %844 = vmatpush1.msra.mxu0 0.0
    %845 = vmatprep.subr.mxu0 0.0
    %846 = vmatpush1.msra.mxu0 0.0
    %847 = vmatprep.subr.mxu0 0.0
    %848 = vmatpush1.msra.mxu0 0.0
    %849 = vmatprep.subr.mxu0 0.0
    %850 = vmatpush1.msra.mxu0 0.0
    %851 = vmatprep.subr.mxu0 0.0
    %852 = vmatpush1.msra.mxu0 0.0
    %853 = vmatprep.subr.mxu0 0.0
    %854 = vmatpush1.msra.mxu0 0.0
    %855 = vmatprep.subr.mxu0 0.0
    %856 = vmatpush1.msra.mxu0 0.0
    %857 = vmatprep.subr.mxu0 0.0
    %858 = vmatpush1.msra.mxu0 0.0
    %859 = vmatprep.subr.mxu0 0.0
    %860 = vmatpush1.msra.mxu0 0.0
    %861 = vmatprep.subr.mxu0 0.0
    %862 = vmatpush1.msra.mxu0 0.0
    %863 = vmatprep.subr.mxu0 0.0
    %864 = vmatpush1.msra.mxu0 0.0
    %865 = vmatprep.mubr.f32.mxu0 0.0
    %866 = vmatmul.mubr.f32.gmra.mrb[0].mxu0 %v799
    %v867 = vpop.f32.mrb[0].mxu0
    %v868 = vadd.f32 0.0, %v867
    %v869 = vpop.f32.mrb[0].mxu0
    %v870 = vadd.f32 0.0, %v869
    %871 = vdwg.mxu0
    %v872 = vadd.f32 %v794, %v868
    %v873 = vadd.f32 %v795, %v870
    %v874 = vxor.u32 %v872, 2147483648
    %v875 = vmul.f32 %v874, 1.442695
    %v876 = vpow.pop %v875
    %v877 = vadd.f32 %v876, 1.0
    %v878 = vrcp.pop %v877
    %v879 = vmul.f32 1.0, %v878
    %v880 = vtanh.pop %v873
    %v881 = vxor.u32 %v873, 2147483648
    %v882 = vmul.f32 %v881, 1.442695
    %v883 = vpow.pop %v882
    %v884 = vadd.f32 %v883, 1.0
    %v885 = vrcp.pop %v884
    %v886 = vmul.f32 1.0, %v885
    %v887 = vmul.f32 %v879, %v790
    %v888 = vmul.f32 %v879, %v880
    %890 = vrot.lane.b32.xlu0 %v888, 64
    %v891 = vpop.permute.xlu0 %890
    %v893 = vadd.f32 %v887, %v891
    %v894 = vtanh.pop %v893
    %v895 = vmul.f32 %v886, %v894
    %897 = vrot.lane.b32.xlu0 %v895, 64
    %v898 = vpop.permute.xlu0 %897
    %900 = vst.msk [vmem:[#allocation2] sm:$0xff] %vm72, %v898
    %902 = vrot.lane.b32.xlu0 %v893, 64
    %v903 = vpop.permute.xlu0 %902
    %905 = vst.msk [vmem:[#allocation3] sm:$0xff] %vm72, %v903
    // Predicated region
    $region30: #{tpu_custom_call.1} parent=1 // pred_check
      %p906 = pneg %p45
    $region31: #{tpu_custom_call.1} parent=1 // pred_check_branch
      %908 = sbr.rel (%p906) target = $region33
    $region32: #{tpu_custom_call.1} parent=1 // pred_region
      %v909 = vld [vmem:[%s2] sm:$0xff]
      %v910 = vld [vmem:[%s2 + $0x8] sm:$0xff]
      %v911 = vld [vmem:[%s2 + $0x10] sm:$0xff]
      %v912 = vld [vmem:[%s2 + $0x18] sm:$0xff]
      %v913 = vld [vmem:[%s2 + $0x20] sm:$0xff]
      %v914 = vld [vmem:[%s2 + $0x28] sm:$0xff]
      %v915 = vld [vmem:[%s2 + $0x30] sm:$0xff]
      %v916 = vld [vmem:[%s2 + $0x38] sm:$0xff]
      %v917 = vld [vmem:[%s3] sm:$0x1]
      %v919 = vlaneseq
      %v920 = vshrl.u32 %v919, 7
      %v921 = vsub.s32 0, %v920
      %v922 = vrot.slane %v917, %v921
      %v924 = vsel %vm72, %v898, 0
      %926 = vmatprep.subr.mxu0 0.0
      %927 = vmatpush1.msra.mxu0 %v909
      %928 = vmatprep.subr.mxu0 0.0
      %929 = vmatpush1.msra.mxu0 %v910
      %930 = vmatprep.subr.mxu0 0.0
      %931 = vmatpush1.msra.mxu0 %v911
      %932 = vmatprep.subr.mxu0 0.0
      %933 = vmatpush1.msra.mxu0 %v912
      %934 = vmatprep.subr.mxu0 0.0
      %935 = vmatpush1.msra.mxu0 %v913
      %936 = vmatprep.subr.mxu0 0.0
      %937 = vmatpush1.msra.mxu0 %v914
      %938 = vmatprep.subr.mxu0 0.0
      %939 = vmatpush1.msra.mxu0 %v915
      %940 = vmatprep.subr.mxu0 0.0
      %941 = vmatpush1.msra.mxu0 %v916
      %942 = vmatprep.subr.mxu0 0.0
      %943 = vmatpush1.msra.mxu0 0.0
      %944 = vmatprep.subr.mxu0 0.0
      %945 = vmatpush1.msra.mxu0 0.0
      %946 = vmatprep.subr.mxu0 0.0
      %947 = vmatpush1.msra.mxu0 0.0
      %948 = vmatprep.subr.mxu0 0.0
      %949 = vmatpush1.msra.mxu0 0.0
      %950 = vmatprep.subr.mxu0 0.0
      %951 = vmatpush1.msra.mxu0 0.0
      %952 = vmatprep.subr.mxu0 0.0
      %953 = vmatpush1.msra.mxu0 0.0
      %954 = vmatprep.subr.mxu0 0.0
      %955 = vmatpush1.msra.mxu0 0.0
      %956 = vmatprep.subr.mxu0 0.0
      %957 = vmatpush1.msra.mxu0 0.0
      %958 = vmatprep.subr.mxu0 0.0
      %959 = vmatpush1.msra.mxu0 0.0
      %960 = vmatprep.subr.mxu0 0.0
      %961 = vmatpush1.msra.mxu0 0.0
      %962 = vmatprep.subr.mxu0 0.0
      %963 = vmatpush1.msra.mxu0 0.0
      %964 = vmatprep.subr.mxu0 0.0
      %965 = vmatpush1.msra.mxu0 0.0
      %966 = vmatprep.subr.mxu0 0.0
      %967 = vmatpush1.msra.mxu0 0.0
      %968 = vmatprep.subr.mxu0 0.0
      %969 = vmatpush1.msra.mxu0 0.0
      %970 = vmatprep.subr.mxu0 0.0
      %971 = vmatpush1.msra.mxu0 0.0
      %972 = vmatprep.subr.mxu0 0.0
      %973 = vmatpush1.msra.mxu0 0.0
      %974 = vmatprep.subr.mxu0 0.0
      %975 = vmatpush1.msra.mxu0 0.0
      %976 = vmatprep.subr.mxu0 0.0
      %977 = vmatpush1.msra.mxu0 0.0
      %978 = vmatprep.subr.mxu0 0.0
      %979 = vmatpush1.msra.mxu0 0.0
      %980 = vmatprep.subr.mxu0 0.0
      %981 = vmatpush1.msra.mxu0 0.0
      %982 = vmatprep.subr.mxu0 0.0
      %983 = vmatpush1.msra.mxu0 0.0
      %984 = vmatprep.subr.mxu0 0.0
      %985 = vmatpush1.msra.mxu0 0.0
      %986 = vmatprep.subr.mxu0 0.0
      %987 = vmatpush1.msra.mxu0 0.0
      %988 = vmatprep.subr.mxu0 0.0
      %989 = vmatpush1.msra.mxu0 0.0
      %990 = vmatprep.mubr.f32.mxu0 0.0
      %991 = vmatmul.mubr.f32.gmra.mrb[0].mxu0 %v924
      %v992 = vpop.f32.mrb[0].mxu0
      %v993 = vadd.f32 %v922, %v992
      %v994 = vpop.f32.mrb[0].mxu0
      %995 = vdwg.mxu0
      %vm996 = vcmask 15360
      %997 = vst.msk [vmem:[%s4] sm:$0xff] %vm996, %v993
    $region33: #{tpu_custom_call.1} parent=1 // pred_fallthru
      _
    // Predicated region
    $region34: #{tpu_custom_call.1} parent=1 // pred_check
      _
    $region35: #{tpu_custom_call.1} parent=1 // pred_check_branch
      %999 = sbr.rel (0) target = $region37
    $region36: #{tpu_custom_call.1} parent=1 // pred_region
      _
    $region37: #{tpu_custom_call.1} parent=1 // pred_fallthru
      _
    // Predicated region
    $region38: #{tpu_custom_call.1} parent=1 // pred_check
      _
    $region39: #{tpu_custom_call.1} parent=1 // pred_check_branch
      %1001 = sbr.rel (0) target = $region41
    $region40: #{tpu_custom_call.1} parent=1 // pred_region
      _
    $region41: #{tpu_custom_call.1} parent=1 // pred_fallthru
      _
    %1002 = vsyncpa [#allocation5], 1
    %1003 = vsyncpa [#allocation7], 1

</llo_original>
